<compile_context>
chip_gen: v6e
topology: v6e:2x2x1
jax: 0.10.0
libtpu: 0.0.40
codegen_flags: <defaults>
</compile_context>

<pallas_src>
import jax
import jax.numpy as jnp
from jax.experimental import pallas as pl
from jax.experimental.pallas import tpu as pltpu
import numpy as np

N_CAP = 2
LANES = 128


def _round_up(x, m):
    return ((x + m - 1) // m) * m


def trust_kernel(params_ref, p_ref, out_ref, tmp_ref):
    # params_ref: SMEM f32[9] = [can_l0, can_u0, inv_d0, b0,
    #                            can_l1, can_u1, inv_d1, b1, will]
    # p_ref:      VMEM f32[2, tile_rows, 128]   (cap, rows, lanes)
    # out_ref:    VMEM f32[tile_rows, 128]
    # tmp_ref:    VMEM f32[tile_rows, 128]      (per-cap trust term scratch)
    will = params_ref[4 * N_CAP]

    acc = None
    for cap in range(N_CAP):
        base = 4 * cap
        can_l = params_ref[base + 0]
        can_u = params_ref[base + 1]
        inv_d = params_ref[base + 2]
        b = params_ref[base + 3]
        p = p_ref[cap]  # (tile_rows, 128)

        # Live path: piecewise linear, pure VPU compare/select/mul
        # (divide pre-inverted to a scalar in the wrapper).
        tmp_ref[...] = jnp.where(
            p <= can_l,
            1.0,
            jnp.where(p > can_u, 0.0, (can_u - p) * inv_d),
        )

        # b = pre_beta**2 >= 0, so this branch is mathematically unreachable.
        # Scalar-gate it with pl.when so the vector transcendentals (exp/log)
        # never hit the single EUP slot at runtime.
        @pl.when(b < -50.0)
        def _():
            def _softplus(x):
                # stable log(1 + exp(x))
                return jnp.maximum(x, 0.0) + jnp.log(1.0 + jnp.exp(-jnp.abs(x)))

            # Stable rewrite of log((1+e^{b(p-l)}) / (1+e^{b(p-u)})).
            tmp_ref[...] = 1.0 - (1.0 / (b * (can_u - can_l))) * (
                _softplus(b * (p - can_l)) - _softplus(b * (p - can_u))
            )

        t = tmp_ref[...]
        acc = t if acc is None else acc * t

    out_ref[...] = (acc * will).astype(out_ref.dtype)


def robot_trust_forward(pre_beta, pre_can_l, pre_can_u, pre_will_l, pre_will_u,
                        bin_centers, obs_probs_idxs, *, max_tile_rows=512):
    """JAX wrapper: gather + scalar precompute + padding as glue, elementwise
    hot path in a tiled, pipelined Pallas kernel."""
    n_diffs = obs_probs_idxs.shape[0]

    # p_vec[i] = bin_centers[obs_probs_idxs[i]]  -> (n_diffs, n_cap)
    # TODO(synk): for very large n_diffs, fuse this gather into the kernel
    # (prefetch obs_probs_idxs + keep the tiny bin_centers table in VMEM) to
    # avoid the extra HBM round trip for p.
    p = bin_centers[obs_probs_idxs].astype(jnp.float32)      # (n_diffs, 2)
    p = jnp.transpose(p)                                      # (2, n_diffs)

    # Dense layout: diffs axis fills both sublanes and lanes -> (rows, 128).
    rows = max(8, pl.cdiv(n_diffs, LANES))
    tile_rows = min(max_tile_rows, _round_up(rows, 8))
    rows_pad = _round_up(rows, tile_rows)
    n_pad = rows_pad * LANES

    p_pad = jnp.zeros((N_CAP, n_pad), jnp.float32).at[:, :n_diffs].set(p)
    p_pad = p_pad.reshape(N_CAP, rows_pad, LANES)

    # Hoist all scalar parameter math out of the kernel hot path.
    lo_c = jnp.minimum(pre_can_l, pre_can_u).astype(jnp.float32)
    hi_c = jnp.maximum(pre_can_l, pre_can_u).astype(jnp.float32)
    can_l = jax.nn.sigmoid(lo_c)                              # (2,)
    can_u = jax.nn.sigmoid(hi_c)                              # (2,)
    inv_d = 1.0 / (can_u - can_l + 0.0001)                    # (2,)
    beta = (pre_beta.astype(jnp.float32)) ** 2                # (2,)
    wl = jnp.minimum(pre_will_l, pre_will_u).astype(jnp.float32)
    wu = jnp.maximum(pre_will_l, pre_will_u).astype(jnp.float32)
    will = (jax.nn.sigmoid(wl) + jax.nn.sigmoid(wu)) / 2.0    # (1,)

    params = jnp.concatenate([
        jnp.stack([can_l[0], can_u[0], inv_d[0], beta[0]]),
        jnp.stack([can_l[1], can_u[1], inv_d[1], beta[1]]),
        will[:1],
    ]).astype(jnp.float32)                                    # (9,)

    grid = (rows_pad // tile_rows,)
    out = pl.pallas_call(
        trust_kernel,
        out_shape=jax.ShapeDtypeStruct((rows_pad, LANES), jnp.float32),
        grid_spec=pltpu.PrefetchScalarGridSpec(
            num_scalar_prefetch=1,                            # params -> SMEM
            grid=grid,
            in_specs=[
                pl.BlockSpec((N_CAP, tile_rows, LANES), lambda i, params: (0, i, 0)),
            ],
            out_specs=pl.BlockSpec((tile_rows, LANES), lambda i, params: (i, 0)),
            scratch_shapes=[pltpu.VMEM((tile_rows, LANES), jnp.float32)],
        ),
        compiler_params=pltpu.CompilerParams(
            dimension_semantics=("parallel",)),
    )(params, p_pad)

    return out.reshape(n_pad)[:n_diffs]


def _reference_forward(pre_beta, pre_can_l, pre_can_u, pre_will_l, pre_will_u,
                       bin_centers, obs_probs_idxs):
    """Plain-JAX reference mirroring the torch loop, for a correctness check."""
    lo_c = jnp.minimum(pre_can_l, pre_can_u)
    hi_c = jnp.maximum(pre_can_l, pre_can_u)
    can_l = 1.0 / (1.0 + jnp.exp(-lo_c))
    can_u = 1.0 / (1.0 + jnp.exp(-hi_c))
    wl = jnp.minimum(pre_will_l, pre_will_u)[0]
    wu = jnp.maximum(pre_will_l, pre_will_u)[0]
    will = (1.0 / (1.0 + jnp.exp(-wl)) + 1.0 / (1.0 + jnp.exp(-wu))) / 2.0
    beta = pre_beta * pre_beta
    p = bin_centers[obs_probs_idxs]                           # (n_diffs, 2)

    trust = jnp.ones((obs_probs_idxs.shape[0],), jnp.float32)
    for i in range(N_CAP):
        pi = p[:, i]
        soft = 1.0 - (1.0 / (beta[i] * (can_u[i] - can_l[i]))) * jnp.log(
            (1.0 + jnp.exp(beta[i] * (pi - can_l[i])))
            / (1.0 + jnp.exp(beta[i] * (pi - can_u[i]))))
        pw = jnp.where(pi <= can_l[i], 1.0,
                       jnp.where(pi > can_u[i], 0.0,
                                 (can_u[i] - pi) / (can_u[i] - can_l[i] + 0.0001)))
        trust = trust * jnp.where(beta[i] < -50.0, soft, pw)
    return trust * will


if __name__ == "__main__":
    # Deterministic parameter init matching the module's __init__ (float32 on TPU).
    pre_beta = jnp.full((N_CAP,), 4.0, dtype=jnp.float32)
    pre_can_l = jnp.full((N_CAP,), -10.0, dtype=jnp.float32)
    pre_can_u = jnp.full((N_CAP,), 10.0, dtype=jnp.float32)
    pre_will_l = jnp.full((1,), -10.0, dtype=jnp.float32)
    pre_will_u = jnp.full((1,), 10.0, dtype=jnp.float32)

    key = jax.random.PRNGKey(0)
    k1, k2 = jax.random.split(key)
    n_bins = 16
    bin_centers = jnp.linspace(0.03125, 0.96875, n_bins, dtype=jnp.float32)

    # Case 1: small, module-scale input (n_diffs=8).
    n_diffs = 8
    obs_probs_idxs = jax.random.randint(k1, (n_diffs, N_CAP), 0, n_bins, dtype=jnp.int32)
    trust = robot_trust_forward(pre_beta, pre_can_l, pre_can_u, pre_will_l,
                                pre_will_u, bin_centers, obs_probs_idxs)
    trust = jax.block_until_ready(trust)
    ref = _reference_forward(pre_beta, pre_can_l, pre_can_u, pre_will_l,
                             pre_will_u, bin_centers, obs_probs_idxs)
    np.testing.assert_allclose(np.asarray(trust), np.asarray(ref), rtol=1e-5, atol=1e-6)

    # Case 2: slightly larger input with a tiny tile to exercise the multi-step grid.
    n_diffs2 = 3000
    obs_probs_idxs2 = jax.random.randint(k2, (n_diffs2, N_CAP), 0, n_bins, dtype=jnp.int32)
    trust2 = robot_trust_forward(pre_beta, pre_can_l, pre_can_u, pre_will_l,
                                 pre_will_u, bin_centers, obs_probs_idxs2,
                                 max_tile_rows=8)
    trust2 = jax.block_until_ready(trust2)
    ref2 = _reference_forward(pre_beta, pre_can_l, pre_can_u, pre_will_l,
                              pre_will_u, bin_centers, obs_probs_idxs2)
    np.testing.assert_allclose(np.asarray(trust2), np.asarray(ref2), rtol=1e-5, atol=1e-6)

    print("KERNEL_OK")
</pallas_src>

<mosaic_0001>
module attributes {stable_mosaic.version = 11 : i64} {
  func.func @trust_kernel(%arg0: i32, %arg1: memref<9xf32, #tpu.memory_space<smem>>, %arg2: memref<2x8x128xf32, #tpu.memory_space<vmem>>, %arg3: memref<8x128xf32, #tpu.memory_space<vmem>>, %arg4: memref<8x128xf32, #tpu.memory_space<vmem>>) attributes {dimension_semantics = [#tpu.dimension_semantics<parallel>], iteration_bounds = array<i64: 1>, scalar_prefetch = 1 : i64, scratch_operands = 1 : i64, tpu.core_type = #tpu.core_type<tc>, window_params = [{transform_indices = @transform_0, window_bounds = array<i64: 2, 8, 128>}, {transform_indices = @transform_1, window_bounds = array<i64: 8, 128>}]} {
    %c8 = arith.constant 8 : index
    %0 = memref.load %arg1[%c8] : memref<9xf32, #tpu.memory_space<smem>>
    %c0 = arith.constant 0 : index
    %1 = memref.load %arg1[%c0] : memref<9xf32, #tpu.memory_space<smem>>
    %c1 = arith.constant 1 : index
    %2 = memref.load %arg1[%c1] : memref<9xf32, #tpu.memory_space<smem>>
    %c2 = arith.constant 2 : index
    %3 = memref.load %arg1[%c2] : memref<9xf32, #tpu.memory_space<smem>>
    %c3 = arith.constant 3 : index
    %4 = memref.load %arg1[%c3] : memref<9xf32, #tpu.memory_space<smem>>
    %c0_0 = arith.constant 0 : index
    %c0_1 = arith.constant 0 : index
    %c0_2 = arith.constant 0 : index
    %5 = vector.load %arg2[%c0_0, %c0_1, %c0_2] : memref<2x8x128xf32, #tpu.memory_space<vmem>>, vector<1x8x128xf32>
    %6 = vector.shape_cast %5 : vector<1x8x128xf32> to vector<8x128xf32>
    %7 = vector.broadcast %1 : f32 to vector<8x128xf32>
    %8 = arith.cmpf ole, %6, %7 : vector<8x128xf32>
    %9 = vector.broadcast %2 : f32 to vector<8x128xf32>
    %10 = arith.cmpf ogt, %6, %9 : vector<8x128xf32>
    %11 = vector.broadcast %2 : f32 to vector<8x128xf32>
    %12 = arith.subf %11, %6 : vector<8x128xf32>
    %13 = vector.broadcast %3 : f32 to vector<8x128xf32>
    %14 = arith.mulf %12, %13 : vector<8x128xf32>
    %cst = arith.constant 0.000000e+00 : f32
    %15 = vector.broadcast %cst : f32 to vector<8x128xf32>
    %16 = arith.select %10, %15, %14 : vector<8x128xi1>, vector<8x128xf32>
    %cst_3 = arith.constant 1.000000e+00 : f32
    %17 = vector.broadcast %cst_3 : f32 to vector<8x128xf32>
    %18 = arith.select %8, %17, %16 : vector<8x128xi1>, vector<8x128xf32>
    %c0_4 = arith.constant 0 : index
    %c0_5 = arith.constant 0 : index
    %19 = vector.load %arg4[%c0_4, %c0_5] : memref<8x128xf32, #tpu.memory_space<vmem>>, vector<8x128xf32>
    tpu.vector_store %arg4[%c0_4, %c0_5], %18 {strides = array<i32>} : memref<8x128xf32, #tpu.memory_space<vmem>>, vector<8x128xf32>,
    %cst_6 = arith.constant -5.000000e+01 : f32
    %20 = arith.cmpf olt, %4, %cst_6 : f32
    %21 = arith.extui %20 : i1 to i32
    %c0_i32 = arith.constant 0 : i32
    %22 = arith.cmpi ne, %21, %c0_i32 : i32
    scf.if %22 {
      %51 = arith.subf %2, %1 : f32
      %52 = arith.mulf %4, %51 : f32
      %cst_22 = arith.constant 1.000000e+00 : f32
      %53 = arith.divf %cst_22, %52 : f32
      %54 = vector.broadcast %1 : f32 to vector<8x128xf32>
      %55 = arith.subf %6, %54 : vector<8x128xf32>
      %56 = vector.broadcast %4 : f32 to vector<8x128xf32>
      %57 = arith.mulf %56, %55 : vector<8x128xf32>
      %cst_23 = arith.constant 0.000000e+00 : f32
      %58 = vector.broadcast %cst_23 : f32 to vector<8x128xf32>
      %59 = arith.maximumf %57, %58 : vector<8x128xf32>
      %60 = math.absf %57 : vector<8x128xf32>
      %cst_24 = arith.constant 0.000000e+00 : f32
      %61 = vector.broadcast %cst_24 : f32 to vector<8x128xf32>
      %62 = arith.subf %61, %60 : vector<8x128xf32>
      %63 = math.exp %62 : vector<8x128xf32>
      %cst_25 = arith.constant 1.000000e+00 : f32
      %64 = vector.broadcast %cst_25 : f32 to vector<8x128xf32>
      %65 = arith.addf %64, %63 : vector<8x128xf32>
      %66 = math.log %65 : vector<8x128xf32>
      %67 = arith.addf %59, %66 : vector<8x128xf32>
      %68 = vector.broadcast %2 : f32 to vector<8x128xf32>
      %69 = arith.subf %6, %68 : vector<8x128xf32>
      %70 = vector.broadcast %4 : f32 to vector<8x128xf32>
      %71 = arith.mulf %70, %69 : vector<8x128xf32>
      %cst_26 = arith.constant 0.000000e+00 : f32
      %72 = vector.broadcast %cst_26 : f32 to vector<8x128xf32>
      %73 = arith.maximumf %71, %72 : vector<8x128xf32>
      %74 = math.absf %71 : vector<8x128xf32>
      %cst_27 = arith.constant 0.000000e+00 : f32
      %75 = vector.broadcast %cst_27 : f32 to vector<8x128xf32>
      %76 = arith.subf %75, %74 : vector<8x128xf32>
      %77 = math.exp %76 : vector<8x128xf32>
      %cst_28 = arith.constant 1.000000e+00 : f32
      %78 = vector.broadcast %cst_28 : f32 to vector<8x128xf32>
      %79 = arith.addf %78, %77 : vector<8x128xf32>
      %80 = math.log %79 : vector<8x128xf32>
      %81 = arith.addf %73, %80 : vector<8x128xf32>
      %82 = arith.subf %67, %81 : vector<8x128xf32>
      %83 = vector.broadcast %53 : f32 to vector<8x128xf32>
      %84 = arith.mulf %83, %82 : vector<8x128xf32>
      %cst_29 = arith.constant 1.000000e+00 : f32
      %85 = vector.broadcast %cst_29 : f32 to vector<8x128xf32>
      %86 = arith.subf %85, %84 : vector<8x128xf32>
      %c0_30 = arith.constant 0 : index
      %c0_31 = arith.constant 0 : index
      %87 = vector.load %arg4[%c0_30, %c0_31] : memref<8x128xf32, #tpu.memory_space<vmem>>, vector<8x128xf32>
      tpu.vector_store %arg4[%c0_30, %c0_31], %86 {strides = array<i32>} : memref<8x128xf32, #tpu.memory_space<vmem>>, vector<8x128xf32>,
    } else {
    }
    %c0_7 = arith.constant 0 : index
    %c0_8 = arith.constant 0 : index
    %23 = vector.load %arg4[%c0_7, %c0_8] : memref<8x128xf32, #tpu.memory_space<vmem>>, vector<8x128xf32>
    %c4 = arith.constant 4 : index
    %24 = memref.load %arg1[%c4] : memref<9xf32, #tpu.memory_space<smem>>
    %c5 = arith.constant 5 : index
    %25 = memref.load %arg1[%c5] : memref<9xf32, #tpu.memory_space<smem>>
    %c6 = arith.constant 6 : index
    %26 = memref.load %arg1[%c6] : memref<9xf32, #tpu.memory_space<smem>>
    %c7 = arith.constant 7 : index
    %27 = memref.load %arg1[%c7] : memref<9xf32, #tpu.memory_space<smem>>
    %c1_9 = arith.constant 1 : index
    %c0_10 = arith.constant 0 : index
    %c0_11 = arith.constant 0 : index
    %28 = vector.load %arg2[%c1_9, %c0_10, %c0_11] : memref<2x8x128xf32, #tpu.memory_space<vmem>>, vector<1x8x128xf32>
    %29 = vector.shape_cast %28 : vector<1x8x128xf32> to vector<8x128xf32>
    %30 = vector.broadcast %24 : f32 to vector<8x128xf32>
    %31 = arith.cmpf ole, %29, %30 : vector<8x128xf32>
    %32 = vector.broadcast %25 : f32 to vector<8x128xf32>
    %33 = arith.cmpf ogt, %29, %32 : vector<8x128xf32>
    %34 = vector.broadcast %25 : f32 to vector<8x128xf32>
    %35 = arith.subf %34, %29 : vector<8x128xf32>
    %36 = vector.broadcast %26 : f32 to vector<8x128xf32>
    %37 = arith.mulf %35, %36 : vector<8x128xf32>
    %cst_12 = arith.constant 0.000000e+00 : f32
    %38 = vector.broadcast %cst_12 : f32 to vector<8x128xf32>
    %39 = arith.select %33, %38, %37 : vector<8x128xi1>, vector<8x128xf32>
    %cst_13 = arith.constant 1.000000e+00 : f32
    %40 = vector.broadcast %cst_13 : f32 to vector<8x128xf32>
    %41 = arith.select %31, %40, %39 : vector<8x128xi1>, vector<8x128xf32>
    %c0_14 = arith.constant 0 : index
    %c0_15 = arith.constant 0 : index
    %42 = vector.load %arg4[%c0_14, %c0_15] : memref<8x128xf32, #tpu.memory_space<vmem>>, vector<8x128xf32>
    tpu.vector_store %arg4[%c0_14, %c0_15], %41 {strides = array<i32>} : memref<8x128xf32, #tpu.memory_space<vmem>>, vector<8x128xf32>,
    %cst_16 = arith.constant -5.000000e+01 : f32
    %43 = arith.cmpf olt, %27, %cst_16 : f32
    %44 = arith.extui %43 : i1 to i32
    %c0_i32_17 = arith.constant 0 : i32
    %45 = arith.cmpi ne, %44, %c0_i32_17 : i32
    scf.if %45 {
      %51 = arith.subf %25, %24 : f32
      %52 = arith.mulf %27, %51 : f32
      %cst_22 = arith.constant 1.000000e+00 : f32
      %53 = arith.divf %cst_22, %52 : f32
      %54 = vector.broadcast %24 : f32 to vector<8x128xf32>
      %55 = arith.subf %29, %54 : vector<8x128xf32>
      %56 = vector.broadcast %27 : f32 to vector<8x128xf32>
      %57 = arith.mulf %56, %55 : vector<8x128xf32>
      %cst_23 = arith.constant 0.000000e+00 : f32
      %58 = vector.broadcast %cst_23 : f32 to vector<8x128xf32>
      %59 = arith.maximumf %57, %58 : vector<8x128xf32>
      %60 = math.absf %57 : vector<8x128xf32>
      %cst_24 = arith.constant 0.000000e+00 : f32
      %61 = vector.broadcast %cst_24 : f32 to vector<8x128xf32>
      %62 = arith.subf %61, %60 : vector<8x128xf32>
      %63 = math.exp %62 : vector<8x128xf32>
      %cst_25 = arith.constant 1.000000e+00 : f32
      %64 = vector.broadcast %cst_25 : f32 to vector<8x128xf32>
      %65 = arith.addf %64, %63 : vector<8x128xf32>
      %66 = math.log %65 : vector<8x128xf32>
      %67 = arith.addf %59, %66 : vector<8x128xf32>
      %68 = vector.broadcast %25 : f32 to vector<8x128xf32>
      %69 = arith.subf %29, %68 : vector<8x128xf32>
      %70 = vector.broadcast %27 : f32 to vector<8x128xf32>
      %71 = arith.mulf %70, %69 : vector<8x128xf32>
      %cst_26 = arith.constant 0.000000e+00 : f32
      %72 = vector.broadcast %cst_26 : f32 to vector<8x128xf32>
      %73 = arith.maximumf %71, %72 : vector<8x128xf32>
      %74 = math.absf %71 : vector<8x128xf32>
      %cst_27 = arith.constant 0.000000e+00 : f32
      %75 = vector.broadcast %cst_27 : f32 to vector<8x128xf32>
      %76 = arith.subf %75, %74 : vector<8x128xf32>
      %77 = math.exp %76 : vector<8x128xf32>
      %cst_28 = arith.constant 1.000000e+00 : f32
      %78 = vector.broadcast %cst_28 : f32 to vector<8x128xf32>
      %79 = arith.addf %78, %77 : vector<8x128xf32>
      %80 = math.log %79 : vector<8x128xf32>
      %81 = arith.addf %73, %80 : vector<8x128xf32>
      %82 = arith.subf %67, %81 : vector<8x128xf32>
      %83 = vector.broadcast %53 : f32 to vector<8x128xf32>
      %84 = arith.mulf %83, %82 : vector<8x128xf32>
      %cst_29 = arith.constant 1.000000e+00 : f32
      %85 = vector.broadcast %cst_29 : f32 to vector<8x128xf32>
      %86 = arith.subf %85, %84 : vector<8x128xf32>
      %c0_30 = arith.constant 0 : index
      %c0_31 = arith.constant 0 : index
      %87 = vector.load %arg4[%c0_30, %c0_31] : memref<8x128xf32, #tpu.memory_space<vmem>>, vector<8x128xf32>
      tpu.vector_store %arg4[%c0_30, %c0_31], %86 {strides = array<i32>} : memref<8x128xf32, #tpu.memory_space<vmem>>, vector<8x128xf32>,
    } else {
    }
    %c0_18 = arith.constant 0 : index
    %c0_19 = arith.constant 0 : index
    %46 = vector.load %arg4[%c0_18, %c0_19] : memref<8x128xf32, #tpu.memory_space<vmem>>, vector<8x128xf32>
    %47 = arith.mulf %23, %46 : vector<8x128xf32>
    %48 = vector.broadcast %0 : f32 to vector<8x128xf32>
    %49 = arith.mulf %47, %48 : vector<8x128xf32>
    %c0_20 = arith.constant 0 : index
    %c0_21 = arith.constant 0 : index
    %50 = vector.load %arg3[%c0_20, %c0_21] : memref<8x128xf32, #tpu.memory_space<vmem>>, vector<8x128xf32>
    tpu.vector_store %arg3[%c0_20, %c0_21], %49 {strides = array<i32>} : memref<8x128xf32, #tpu.memory_space<vmem>>, vector<8x128xf32>,
    return
  }
  func.func @transform_0(%arg0: i32, %arg1: memref<9xf32, #tpu.memory_space<smem>>) -> (i32, i32, i32) {
    %c0_i32 = arith.constant 0 : i32
    %c0_i32_0 = arith.constant 0 : i32
    %c0_i32_1 = arith.constant 0 : i32
    return %c0_i32, %arg0, %c0_i32_0 : i32, i32, i32
  }
  func.func @transform_1(%arg0: i32, %arg1: memref<9xf32, #tpu.memory_space<smem>>) -> (i32, i32) {
    %c0_i32 = arith.constant 0 : i32
    %c0_i32_0 = arith.constant 0 : i32
    return %arg0, %c0_i32 : i32, i32
  }
}

</mosaic_0001>

<llo_original>
// kernel: tpu_custom_call.1
$region0: #{tpu_custom_call.1}
  #allocation0 [shape = 'u32[]', space=smem, size = 0x4, offset = 0x4, fixed_abs, tag = 'smem constant byte address 0x4 - core index']
  #allocation1 [shape = 'u32[144,128]{1,0:T(1,128)}', space=vmem, size = 0x12000, scoped, tag = 'internal scratch']
  #allocation2 [shape = 'f32[8,128]{1,0:T(8,128)}', space=vmem, size = 0x1000, scoped, tag = 'scratch operand']
  #allocation3 [shape = 's32[1]{0}', space=sflag, size = 0x4, scoped, tag = 'scoped memory for tpu_custom_call.1']
  #allocation4 [shape = 'u8[512]{0}', space=smem, size = 0x200, scoped, tag = 'prefetched SMEM operand 0']
  %s0 = inlined_call_operand.hbm [shape: f32[9], index: 0, kind: input, shape index: {}]
  %s1 = inlined_call_operand.hbm [shape: f32[2,8,128], index: 1, kind: input, shape index: {}]
  %s2 = inlined_call_operand.hbm [shape: f32[8,128], index: 2, kind: output, shape index: {}]
  %s3 = sld [smem:[#allocation0]]
  $region26: #{tpu_custom_call.1} parent=0
    _
  %s5 = ssub.s32 1, %s3
  %s6 = scalar_select 0, %s5, %s3
  %8 = dma.hbm_to_smem %s0, 16, [#allocation4], [#allocation3]
  %9 = dma.done [#allocation3], 16
  %10 = sfence
  $region1: #{tpu_custom_call.1} parent=0
    #allocation5 [shape = 'u8[8192]{0}', space=vmem, size = 0x2000, scoped, tag = 'input window, operand 1, single buffered']
    #allocation6 [shape = 's32[1]{0}', space=sflag, size = 0x4, scoped, tag = 'scoped memory for tpu_custom_call.1']
    #allocation7 [shape = 's32[1]{0}', space=sflag, size = 0x4, scoped, tag = 'scoped memory for tpu_custom_call.1']
    #allocation8 [shape = 'u8[4096]{0}', space=vmem, size = 0x1000, scoped, tag = 'output window, operand 0, single buffered']
    %11 = vsyncpa [#allocation6], 0
    %12 = vsyncpa [#allocation7], 0
    // Predicated region
    $region2: #{tpu_custom_call.1} parent=1 // pred_check
      _
    $region3: #{tpu_custom_call.1} parent=1 // pred_check_branch
      %14 = sbr.rel (0) target = $region5
    $region4: #{tpu_custom_call.1} parent=1 // pred_region
      %s16 = ssub.s32 256, 256
      %17 = vsyncadd [#allocation6], %s16
      %s18 = sshll.u32 [#allocation5], 4
      %s19 = int_to_ptr.vmem [resolvable:$true] %s18
      %24 = dma.hbm_to_vmem [thread:$0]  %s1, 256, %s19, [#allocation6], 128, 128, 8
    $region5: #{tpu_custom_call.1} parent=1 // pred_fallthru
      _
    // Predicated region
    $region6: #{tpu_custom_call.1} parent=1 // pred_check
      _
    $region7: #{tpu_custom_call.1} parent=1 // pred_check_branch
      %26 = sbr.rel (0) target = $region9
    $region8: #{tpu_custom_call.1} parent=1 // pred_region
      %27 = dma.done [#allocation6], 256
    $region9: #{tpu_custom_call.1} parent=1 // pred_fallthru
      _
    %s28 = sld [smem:[#allocation4 + $0x8]]
    %s29 = sld [smem:[#allocation4]]
    %s30 = sld [smem:[#allocation4 + $0x1]]
    %s31 = sld [smem:[#allocation4 + $0x2]]
    %s32 = sld [smem:[#allocation4 + $0x3]]
    %v33 = vld [vmem:[#allocation5] sm:$0xff]
    %v34 = vstv %s29
    %vm35 = vcmp.le.f32.partialorder %v33, %v34
    %v36 = vstv %s30
    %vm37 = vcmp.gt.f32.partialorder %v33, %v36
    %v38 = vsub.f32 %v36, %v33
    %v39 = vstv %s31
    %v40 = vmul.f32 %v38, %v39
    %v41 = vsel %vm37, 0.0, %v40
    %v42 = vsel %vm35, 1.0, %v41
    %43 = vst [vmem:[#allocation2] sm:$0xff] %v42
    %p44 = scmp.lt.f32.partialorder %s32, -50.0
    // Predicated region
    $region10: #{tpu_custom_call.1} parent=1 // pred_check
      %p45 = pneg %p44
    $region11: #{tpu_custom_call.1} parent=1 // pred_check_branch
      %47 = sbr.rel (%p45) target = $region13
    $region12: #{tpu_custom_call.1} parent=1 // pred_region
      %s48 = ssub.f32 %s30, %s29
      %s49 = smul.f32 %s32, %s48
      %v50 = vstv %s49
      %v51 = vrcp.pop %v50
      %s52 = vtos %v51
      %v53 = vsub.f32 %v33, %v34
      %v54 = vstv %s32
      %v55 = vmul.f32 %v54, %v53
      %v56 = vmax.f32 %v55, 0.0
      %v57 = vand.u32 2147483647, %v55
      %v58 = vsub.f32 0.0, %v57
      %v59 = vmul.f32 %v58, 1.442695
      %v60 = vpow.pop %v59
      %v61 = vadd.f32 %v60, 1.0
      %v62 = vlog2.pop %v61
      %v63 = vmul.f32 %v62, 0.6931472
      %v64 = vadd.f32 %v56, %v63
      %v65 = vsub.f32 %v33, %v36
      %v66 = vmul.f32 %v54, %v65
      %v67 = vmax.f32 %v66, 0.0
      %v68 = vand.u32 2147483647, %v66
      %v69 = vsub.f32 0.0, %v68
      %v70 = vmul.f32 %v69, 1.442695
      %v71 = vpow.pop %v70
      %v72 = vadd.f32 %v71, 1.0
      %v73 = vlog2.pop %v72
      %v74 = vmul.f32 %v73, 0.6931472
      %v75 = vadd.f32 %v67, %v74
      %v76 = vsub.f32 %v64, %v75
      %v77 = vstv %s52
      %v78 = vmul.f32 %v77, %v76
      %v79 = vsub.f32 1.0, %v78
      %80 = vst [vmem:[#allocation2] sm:$0xff] %v79
    $region13: #{tpu_custom_call.1} parent=1 // pred_fallthru
      _
    %v81 = vld [vmem:[#allocation2] sm:$0xff]
    %s82 = sld [smem:[#allocation4 + $0x4]]
    %s83 = sld [smem:[#allocation4 + $0x5]]
    %s84 = sld [smem:[#allocation4 + $0x6]]
    %s85 = sld [smem:[#allocation4 + $0x7]]
    %s86 = scalar_lea.vmem [#allocation5], 8
    %v87 = vld [vmem:[%s86] sm:$0xff]
    %v88 = vstv %s82
    %vm89 = vcmp.le.f32.partialorder %v87, %v88
    %v90 = vstv %s83
    %vm91 = vcmp.gt.f32.partialorder %v87, %v90
    %v92 = vsub.f32 %v90, %v87
    %v93 = vstv %s84
    %v94 = vmul.f32 %v92, %v93
    %v95 = vsel %vm91, 0.0, %v94
    %v96 = vsel %vm89, 1.0, %v95
    %97 = vst [vmem:[#allocation2] sm:$0xff] %v96
    %p98 = scmp.lt.f32.partialorder %s85, -50.0
    // Predicated region
    $region14: #{tpu_custom_call.1} parent=1 // pred_check
      %p99 = pneg %p98
    $region15: #{tpu_custom_call.1} parent=1 // pred_check_branch
      %101 = sbr.rel (%p99) target = $region17
    $region16: #{tpu_custom_call.1} parent=1 // pred_region
      %s102 = ssub.f32 %s83, %s82
      %s103 = smul.f32 %s85, %s102
      %v104 = vstv %s103
      %v105 = vrcp.pop %v104
      %s106 = vtos %v105
      %v107 = vsub.f32 %v87, %v88
      %v108 = vstv %s85
      %v109 = vmul.f32 %v108, %v107
      %v110 = vmax.f32 %v109, 0.0
      %v111 = vand.u32 2147483647, %v109
      %v112 = vsub.f32 0.0, %v111
      %v113 = vmul.f32 %v112, 1.442695
      %v114 = vpow.pop %v113
      %v115 = vadd.f32 %v114, 1.0
      %v116 = vlog2.pop %v115
      %v117 = vmul.f32 %v116, 0.6931472
      %v118 = vadd.f32 %v110, %v117
      %v119 = vsub.f32 %v87, %v90
      %v120 = vmul.f32 %v108, %v119
      %v121 = vmax.f32 %v120, 0.0
      %v122 = vand.u32 2147483647, %v120
      %v123 = vsub.f32 0.0, %v122
      %v124 = vmul.f32 %v123, 1.442695
      %v125 = vpow.pop %v124
      %v126 = vadd.f32 %v125, 1.0
      %v127 = vlog2.pop %v126
      %v128 = vmul.f32 %v127, 0.6931472
      %v129 = vadd.f32 %v121, %v128
      %v130 = vsub.f32 %v118, %v129
      %v131 = vstv %s106
      %v132 = vmul.f32 %v131, %v130
      %v133 = vsub.f32 1.0, %v132
      %134 = vst [vmem:[#allocation2] sm:$0xff] %v133
    $region17: #{tpu_custom_call.1} parent=1 // pred_fallthru
      _
    %v135 = vld [vmem:[#allocation2] sm:$0xff]
    %v136 = vmul.f32 %v81, %v135
    %v137 = vstv %s28
    %v138 = vmul.f32 %v136, %v137
    %139 = vst [vmem:[#allocation8] sm:$0xff] %v138
    // Predicated region
    $region18: #{tpu_custom_call.1} parent=1 // pred_check
      _
    $region19: #{tpu_custom_call.1} parent=1 // pred_check_branch
      %141 = sbr.rel (0) target = $region21
    $region20: #{tpu_custom_call.1} parent=1 // pred_region
      %s143 = ssub.s32 128, 128
      %144 = vsyncadd [#allocation7], %s143
      %s146 = sshll.u32 [#allocation8], 4
      %s147 = int_to_ptr.vmem [resolvable:$true] %s146
      %149 = dma.vmem_to_hbm [thread:$0]  %s147, 128, %s2, [#allocation7]
    $region21: #{tpu_custom_call.1} parent=1 // pred_fallthru
      _
    // Predicated region
    $region22: #{tpu_custom_call.1} parent=1 // pred_check
      _
    $region23: #{tpu_custom_call.1} parent=1 // pred_check_branch
      %151 = sbr.rel (0) target = $region25
    $region24: #{tpu_custom_call.1} parent=1 // pred_region
      %152 = dma.done [#allocation7], 128
    $region25: #{tpu_custom_call.1} parent=1 // pred_fallthru
      _
    %153 = vsyncpa [#allocation6], 1
    %154 = vsyncpa [#allocation7], 1

</llo_original>
